<compile_context>
chip_gen: v7x
topology: tpu7x:2x2x1
jax: 0.10.0
libtpu: 0.0.40
codegen_flags: <defaults>
</compile_context>

<pallas_src>
import math
import functools

import jax
import jax.numpy as jnp
from jax.experimental import pallas as pl
from jax.experimental.pallas import tpu as pltpu


# ----------------------------------------------------------------------------
# Pallas kernel: fused projection + per-MSA-row residual + RMSNorm for a tile
# of `tile` sequence positions.
# ----------------------------------------------------------------------------
def _msa_sa_kernel(x_ref, w_ref, b_ref, g_ref, o_ref, *, m, d, eps):
    # x_ref / o_ref: (tile, M*D) lane-dense slabs; lanes are [row0|row1|...].
    # w_ref: (D, D) fused projection (input dtype); b_ref/g_ref: (1, D) f32.
    x_in = x_ref[...]                                   # (T, M*D), input dtype
    x0 = x_in[:, :d]                                    # MSA row 0 features

    # Single fused matmul: attention output == V (key length 1) and
    # W_v^T @ W_o_folded was pre-computed offline in f32.
    y0 = jnp.dot(x0, w_ref[...], preferred_element_type=jnp.float32)
    y0 = y0 + b_ref[...]                                # (T, D), f32

    gamma = g_ref[...]                                  # (1, D), f32
    lane_aligned = (d % 128) == 0                       # static python condition

    cols = []
    for mi in range(m):                                 # m is a small static int
        # Residual for this MSA row; cast only the (T, D) slice to f32.
        xm = x_in[:, mi * d:(mi + 1) * d].astype(jnp.float32)
        y = y0 + xm
        ms = jnp.mean(y * y, axis=-1, keepdims=True)
        out_m = (y * jax.lax.rsqrt(ms + eps) * gamma).astype(o_ref.dtype)
        if lane_aligned:
            # 128-lane-aligned direct store: unmasked vst, no concat temporary.
            o_ref[:, mi * d:(mi + 1) * d] = out_m
        else:
            cols.append(out_m)                          # already output dtype
    if not lane_aligned:
        o_ref[...] = jnp.concatenate(cols, axis=1)      # one lane-dense store


# ----------------------------------------------------------------------------
# Tile selection: VMEM-budget driven, pad N instead of divisor search.
# ----------------------------------------------------------------------------
def _round_up(x, mult):
    return ((x + mult - 1) // mult) * mult


def _choose_row_tile(n, lanes, in_itemsize, out_itemsize, *, requested=1024,
                     pipeline_budget_bytes=24 << 20):
    """Pick the row tile from a VMEM budget for the double-buffered in/out tiles.

    24 MiB for 2x(in + out) tiles is safe on every generation (v7x: 64 MiB
    VMEM / 32 MiB scoped default per TC; v5e/v6e: 128 MiB).  Tiles are
    multiples of 32 rows (sublane-safe for f32/bf16/int8); N is padded up to a
    tile multiple in the wrapper, so tile=1 / odd tiles can never happen.
    """
    bytes_per_row = 2 * lanes * (in_itemsize + out_itemsize)
    cap = max(32, pipeline_budget_bytes // max(1, bytes_per_row))
    tile = max(32, (min(requested, cap) // 32) * 32)
    tile = min(tile, _round_up(n, 32))
    # Balance the last block so padding waste stays small.
    nblocks = -(-n // tile)
    tile = min(tile, _round_up(-(-n // nblocks), 32))
    return tile


# ----------------------------------------------------------------------------
# Wrapper: PyTorch layout (B, M, S, D) in, (B, S, M, D) out.
# ----------------------------------------------------------------------------
def msa_self_attention(x, params, *, n_heads, n_kv, d_attn, eps=1e-5,
                       row_tile=1024):
    b, m, s, d = x.shape
    assert n_heads % n_kv == 0, "n_heads must be divisible by n_kv"
    g_heads, a = n_kv, d_attn
    r = n_heads // n_kv

    # literal `x.view(b, s, m, d)` from the reference (row-major reinterpret),
    # then flatten to a lane-dense (N, M*D) slab.
    n = b * s
    xf = x.reshape(n, m * d)

    # --- Offline weight fusion (all in f32) ---------------------------------
    # V-only slice of w_kv: rows [g*2A + A : g*2A + 2A) for each kv head g.
    wkv, bkv = params["wkv"], params["bkv"]
    wv = wkv.reshape(g_heads, 2 * a, d)[:, a:, :].reshape(g_heads * a, d)
    bv = bkv.reshape(g_heads, 2 * a)[:, a:].reshape(g_heads * a)
    # Fold w_o over the r repeated query heads per KV head (H*A -> G*A).
    wo_t = params["wo"].T.astype(jnp.float32)                        # (H*A, D)
    wo_f = wo_t.reshape(g_heads, r, a, d).sum(axis=1).reshape(g_heads * a, d)
    # Fuse the two projections into one DxD matmul (no intermediate rounding).
    w_fused = (wv.T.astype(jnp.float32) @ wo_f).astype(x.dtype)      # (D, D)
    b_fused = (bv.astype(jnp.float32) @ wo_f
               + params["bo"].astype(jnp.float32)).reshape(1, d)     # f32
    gamma2 = params["gamma"].reshape(1, d).astype(jnp.float32)

    # --- Tiling / padding ----------------------------------------------------
    in_item = jnp.dtype(x.dtype).itemsize
    tile = _choose_row_tile(n, m * d, in_item, in_item, requested=row_tile)
    n_pad = -(-n // tile) * tile
    if n_pad != n:
        xf = jnp.pad(xf, ((0, n_pad - n), (0, 0)))      # zero rows are benign
    grid = (n_pad // tile,)

    # VMEM limit: double-buffered x/out tiles + resident weights + headroom
    # for the kernel's (tile, D) f32 intermediates.  Capped below v7x's 64 MiB.
    tile_bytes = tile * m * d * in_item
    w_bytes = w_fused.size * in_item + (b_fused.size + gamma2.size) * 4
    vmem_bytes = int(4 * tile_bytes + 2 * w_bytes + 3 * tile * d * 4) + (8 << 20)
    vmem_bytes = max(16 << 20, min(vmem_bytes, 48 << 20))

    kernel = functools.partial(_msa_sa_kernel, m=m, d=d, eps=eps)

    out = pl.pallas_call(
        kernel,
        out_shape=jax.ShapeDtypeStruct((n_pad, m * d), x.dtype),
        grid=grid,
        in_specs=[
            pl.BlockSpec((tile, m * d), lambda i: (i, 0)),   # x slab
            pl.BlockSpec((d, d), lambda i: (0, 0)),          # fused projection
            pl.BlockSpec((1, d), lambda i: (0, 0)),          # fused bias (f32)
            pl.BlockSpec((1, d), lambda i: (0, 0)),          # RMSNorm gamma (f32)
        ],
        out_specs=pl.BlockSpec((tile, m * d), lambda i: (i, 0)),
        compiler_params=pltpu.CompilerParams(
            dimension_semantics=("parallel",),
            vmem_limit_bytes=vmem_bytes,
        ),
    )(xf, w_fused, b_fused, gamma2)

    return out[:n].reshape(b, s, m, d)


# ----------------------------------------------------------------------------
# Pure-JAX reference (full Q/K/softmax path, same interpreted semantics).
# ----------------------------------------------------------------------------
def msa_self_attention_ref(x, params, *, n_heads, n_kv, d_attn, eps=1e-5):
    b, m, s, d = x.shape
    h, g, a = n_heads, n_kv, d_attn
    r = h // g
    xr = x.reshape(b, s, m, d)
    q = jnp.einsum('bsmd,ed->bsme', xr, params["wq"]) + params["bq"]
    q = q.reshape(b, s, m, h, a)
    kv = jnp.einsum('bsd,ed->bse', xr[:, :, 0, :], params["wkv"]) + params["bkv"]
    kv = kv.reshape(b, s, g, 2 * a)
    k = jnp.repeat(kv[..., :a], r, axis=2)                      # (b,s,h,a)
    v = jnp.repeat(kv[..., a:], r, axis=2)                      # (b,s,h,a)
    sc = jnp.einsum('bsmha,bsha->bsmh', q, k) / math.sqrt(a)
    p = jax.nn.softmax(sc[..., None], axis=-1)[..., 0]          # key length 1 -> 1.0
    o = p[..., None] * v[:, :, None, :, :]                      # (b,s,m,h,a)
    o = o.reshape(b, s, m, h * a)
    y = jnp.einsum('bsme,de->bsmd', o, params["wo"]) + params["bo"] + xr
    ms = jnp.mean(y * y, axis=-1, keepdims=True)
    return y * jax.lax.rsqrt(ms + eps) * params["gamma"]


if __name__ == "__main__":
    B, M, S, D = 2, 4, 8, 32          # batch, MSA rows, seq, d_model
    N_HEADS, N_KV = 4, 2
    D_ATTN = D // 2                   # default d_attn = d_model // 2

    key = jax.random.PRNGKey(0)
    kx, kq, kkv, ko = jax.random.split(key, 4)

    def init_linear(k, out_f, in_f):
        kw, kb = jax.random.split(k)
        bound = 1.0 / math.sqrt(in_f)            # torch.nn.Linear default-style init
        w = jax.random.uniform(kw, (out_f, in_f), jnp.float32, -bound, bound)
        bvec = jax.random.uniform(kb, (out_f,), jnp.float32, -bound, bound)
        return w, bvec

    wq, bq = init_linear(kq, N_HEADS * D_ATTN, D)        # Linear(d, H*A)  (dead path)
    wkv, bkv = init_linear(kkv, 2 * N_KV * D_ATTN, D)    # Linear(d, 2*G*A)
    wo, bo = init_linear(ko, D, D_ATTN * N_HEADS)        # Linear(H*A, d)
    gamma = jnp.ones((D,), jnp.float32)                  # RMSNorm weight
    params = dict(wq=wq, bq=bq, wkv=wkv, bkv=bkv, wo=wo, bo=bo, gamma=gamma)

    x = jax.random.normal(kx, (B, M, S, D), jnp.float32)

    out = msa_self_attention(x, params, n_heads=N_HEADS, n_kv=N_KV, d_attn=D_ATTN)
    out = jax.block_until_ready(out)

    ref = msa_self_attention_ref(x, params, n_heads=N_HEADS, n_kv=N_KV, d_attn=D_ATTN)
    assert out.shape == (B, S, M, D)
    assert bool(jnp.all(jnp.isfinite(out)))
    max_err = float(jnp.max(jnp.abs(out - ref)))
    assert max_err < 1e-3, f"mismatch vs reference: {max_err}"
    print("KERNEL_OK")
</pallas_src>

<mosaic_0001>
module attributes {stable_mosaic.version = 11 : i64} {
  func.func @_msa_sa_kernel(%arg0: i32, %arg1: memref<32x128xf32, #tpu.memory_space<vmem>>, %arg2: memref<32x32xf32, #tpu.memory_space<vmem>>, %arg3: memref<1x32xf32, #tpu.memory_space<vmem>>, %arg4: memref<1x32xf32, #tpu.memory_space<vmem>>, %arg5: memref<32x128xf32, #tpu.memory_space<vmem>>) attributes {dimension_semantics = [#tpu.dimension_semantics<parallel>], iteration_bounds = array<i64: 1>, scalar_prefetch = 0 : i64, scratch_operands = 0 : i64, tpu.core_type = #tpu.core_type<tc>, window_params = [{transform_indices = @transform_0, window_bounds = array<i64: 32, 128>}, {pipeline_mode = #tpu.pipeline_mode<synchronous>, transform_indices = @transform_1, window_bounds = array<i64: 32, 32>}, {pipeline_mode = #tpu.pipeline_mode<synchronous>, transform_indices = @transform_2, window_bounds = array<i64: 1, 32>}, {pipeline_mode = #tpu.pipeline_mode<synchronous>, transform_indices = @transform_3, window_bounds = array<i64: 1, 32>}, {transform_indices = @transform_4, window_bounds = array<i64: 32, 128>}]} {
    %c0 = arith.constant 0 : index
    %c0_0 = arith.constant 0 : index
    %0 = vector.load %arg1[%c0, %c0_0] : memref<32x128xf32, #tpu.memory_space<vmem>>, vector<32x128xf32>
    %1 = vector.extract_strided_slice %0 {offsets = [0, 0], sizes = [32, 32], strides = [1, 1]} : vector<32x128xf32> to vector<32x32xf32>
    %c0_1 = arith.constant 0 : index
    %c0_2 = arith.constant 0 : index
    %2 = vector.load %arg2[%c0_1, %c0_2] : memref<32x32xf32, #tpu.memory_space<vmem>>, vector<32x32xf32>
    %cst = arith.constant dense<0.000000e+00> : vector<32x32xf32>
    %3 = tpu.matmul %1, %2, %cst {dimension_numbers = #tpu.dot_dimension_numbers<[1], [0], [0], [1], [0, 0, 1, 1], [], []>} : vector<32x32xf32>, vector<32x32xf32>, vector<32x32xf32> -> vector<32x32xf32>
    %c0_3 = arith.constant 0 : index
    %c0_4 = arith.constant 0 : index
    %4 = vector.load %arg3[%c0_3, %c0_4] : memref<1x32xf32, #tpu.memory_space<vmem>>, vector<1x32xf32>
    %5 = vector.broadcast %4 : vector<1x32xf32> to vector<32x32xf32>
    %6 = arith.addf %3, %5 : vector<32x32xf32>
    %c0_5 = arith.constant 0 : index
    %c0_6 = arith.constant 0 : index
    %7 = vector.load %arg4[%c0_5, %c0_6] : memref<1x32xf32, #tpu.memory_space<vmem>>, vector<1x32xf32>
    %8 = vector.extract_strided_slice %0 {offsets = [0, 0], sizes = [32, 32], strides = [1, 1]} : vector<32x128xf32> to vector<32x32xf32>
    %9 = arith.addf %6, %8 : vector<32x32xf32>
    %10 = arith.mulf %9, %9 : vector<32x32xf32>
    %cst_7 = arith.constant dense<0.000000e+00> : vector<32xf32>
    %11 = vector.multi_reduction <add>, %10, %cst_7 [1] : vector<32x32xf32> to vector<32xf32>
    %12 = vector.shape_cast %11 : vector<32xf32> to vector<32x1xf32>
    %cst_8 = arith.constant 3.200000e+01 : f32
    %13 = vector.broadcast %cst_8 : f32 to vector<32x1xf32>
    %14 = arith.divf %12, %13 : vector<32x1xf32>
    %cst_9 = arith.constant 9.99999974E-6 : f32
    %15 = vector.broadcast %cst_9 : f32 to vector<32x1xf32>
    %16 = arith.addf %14, %15 : vector<32x1xf32>
    %17 = math.rsqrt %16 : vector<32x1xf32>
    %18 = vector.broadcast %17 : vector<32x1xf32> to vector<32x32xf32>
    %19 = arith.mulf %9, %18 : vector<32x32xf32>
    %20 = vector.broadcast %7 : vector<1x32xf32> to vector<32x32xf32>
    %21 = arith.mulf %19, %20 : vector<32x32xf32>
    %22 = vector.extract_strided_slice %0 {offsets = [0, 32], sizes = [32, 32], strides = [1, 1]} : vector<32x128xf32> to vector<32x32xf32>
    %23 = arith.addf %6, %22 : vector<32x32xf32>
    %24 = arith.mulf %23, %23 : vector<32x32xf32>
    %cst_10 = arith.constant dense<0.000000e+00> : vector<32xf32>
    %25 = vector.multi_reduction <add>, %24, %cst_10 [1] : vector<32x32xf32> to vector<32xf32>
    %26 = vector.shape_cast %25 : vector<32xf32> to vector<32x1xf32>
    %cst_11 = arith.constant 3.200000e+01 : f32
    %27 = vector.broadcast %cst_11 : f32 to vector<32x1xf32>
    %28 = arith.divf %26, %27 : vector<32x1xf32>
    %cst_12 = arith.constant 9.99999974E-6 : f32
    %29 = vector.broadcast %cst_12 : f32 to vector<32x1xf32>
    %30 = arith.addf %28, %29 : vector<32x1xf32>
    %31 = math.rsqrt %30 : vector<32x1xf32>
    %32 = vector.broadcast %31 : vector<32x1xf32> to vector<32x32xf32>
    %33 = arith.mulf %23, %32 : vector<32x32xf32>
    %34 = vector.broadcast %7 : vector<1x32xf32> to vector<32x32xf32>
    %35 = arith.mulf %33, %34 : vector<32x32xf32>
    %36 = vector.extract_strided_slice %0 {offsets = [0, 64], sizes = [32, 32], strides = [1, 1]} : vector<32x128xf32> to vector<32x32xf32>
    %37 = arith.addf %6, %36 : vector<32x32xf32>
    %38 = arith.mulf %37, %37 : vector<32x32xf32>
    %cst_13 = arith.constant dense<0.000000e+00> : vector<32xf32>
    %39 = vector.multi_reduction <add>, %38, %cst_13 [1] : vector<32x32xf32> to vector<32xf32>
    %40 = vector.shape_cast %39 : vector<32xf32> to vector<32x1xf32>
    %cst_14 = arith.constant 3.200000e+01 : f32
    %41 = vector.broadcast %cst_14 : f32 to vector<32x1xf32>
    %42 = arith.divf %40, %41 : vector<32x1xf32>
    %cst_15 = arith.constant 9.99999974E-6 : f32
    %43 = vector.broadcast %cst_15 : f32 to vector<32x1xf32>
    %44 = arith.addf %42, %43 : vector<32x1xf32>
    %45 = math.rsqrt %44 : vector<32x1xf32>
    %46 = vector.broadcast %45 : vector<32x1xf32> to vector<32x32xf32>
    %47 = arith.mulf %37, %46 : vector<32x32xf32>
    %48 = vector.broadcast %7 : vector<1x32xf32> to vector<32x32xf32>
    %49 = arith.mulf %47, %48 : vector<32x32xf32>
    %50 = vector.extract_strided_slice %0 {offsets = [0, 96], sizes = [32, 32], strides = [1, 1]} : vector<32x128xf32> to vector<32x32xf32>
    %51 = arith.addf %6, %50 : vector<32x32xf32>
    %52 = arith.mulf %51, %51 : vector<32x32xf32>
    %cst_16 = arith.constant dense<0.000000e+00> : vector<32xf32>
    %53 = vector.multi_reduction <add>, %52, %cst_16 [1] : vector<32x32xf32> to vector<32xf32>
    %54 = vector.shape_cast %53 : vector<32xf32> to vector<32x1xf32>
    %cst_17 = arith.constant 3.200000e+01 : f32
    %55 = vector.broadcast %cst_17 : f32 to vector<32x1xf32>
    %56 = arith.divf %54, %55 : vector<32x1xf32>
    %cst_18 = arith.constant 9.99999974E-6 : f32
    %57 = vector.broadcast %cst_18 : f32 to vector<32x1xf32>
    %58 = arith.addf %56, %57 : vector<32x1xf32>
    %59 = math.rsqrt %58 : vector<32x1xf32>
    %60 = vector.broadcast %59 : vector<32x1xf32> to vector<32x32xf32>
    %61 = arith.mulf %51, %60 : vector<32x32xf32>
    %62 = vector.broadcast %7 : vector<1x32xf32> to vector<32x32xf32>
    %63 = arith.mulf %61, %62 : vector<32x32xf32>
    %64 = tpu.concatenate %21, %35, %49, %63 in 1 : vector<32x32xf32>, vector<32x32xf32>, vector<32x32xf32>, vector<32x32xf32> -> vector<32x128xf32>
    %c0_19 = arith.constant 0 : index
    %c0_20 = arith.constant 0 : index
    %65 = vector.load %arg5[%c0_19, %c0_20] : memref<32x128xf32, #tpu.memory_space<vmem>>, vector<32x128xf32>
    tpu.vector_store %arg5[%c0_19, %c0_20], %64 {strides = array<i32>} : memref<32x128xf32, #tpu.memory_space<vmem>>, vector<32x128xf32>,
    return
  }
  func.func @transform_0(%arg0: i32) -> (i32, i32) {
    %c0_i32 = arith.constant 0 : i32
    %c0_i32_0 = arith.constant 0 : i32
    return %arg0, %c0_i32 : i32, i32
  }
  func.func @transform_1(%arg0: i32) -> (i32, i32) {
    %c0_i32 = arith.constant 0 : i32
    %c0_i32_0 = arith.constant 0 : i32
    %c0_i32_1 = arith.constant 0 : i32
    return %c0_i32, %c0_i32_0 : i32, i32
  }
  func.func @transform_2(%arg0: i32) -> (i32, i32) {
    %c0_i32 = arith.constant 0 : i32
    %c0_i32_0 = arith.constant 0 : i32
    %c0_i32_1 = arith.constant 0 : i32
    return %c0_i32, %c0_i32_0 : i32, i32
  }
  func.func @transform_3(%arg0: i32) -> (i32, i32) {
    %c0_i32 = arith.constant 0 : i32
    %c0_i32_0 = arith.constant 0 : i32
    %c0_i32_1 = arith.constant 0 : i32
    return %c0_i32, %c0_i32_0 : i32, i32
  }
  func.func @transform_4(%arg0: i32) -> (i32, i32) {
    %c0_i32 = arith.constant 0 : i32
    %c0_i32_0 = arith.constant 0 : i32
    return %arg0, %c0_i32 : i32, i32
  }
}

</mosaic_0001>

<llo_original>
// kernel: tpu_custom_call.1
$region0: #{tpu_custom_call.1}
  #allocation0 [shape = 'u32[]', space=smem, size = 0x4, offset = 0x4, fixed_abs, tag = 'smem constant byte address 0x4 - core index']
  #allocation1 [shape = 'u32[144,128]{1,0:T(1,128)}', space=vmem, size = 0x12000, scoped, tag = 'internal scratch']
  %s0 = inlined_call_operand.hbm [shape: f32[32,128], index: 0, kind: input, shape index: {}]
  %s1 = inlined_call_operand.hbm [shape: f32[32,32], index: 1, kind: input, shape index: {}]
  %s2 = inlined_call_operand.vmem [shape: f32[1,32], index: 2, kind: input, shape index: {}]
  %s3 = inlined_call_operand.vmem [shape: f32[1,32], index: 3, kind: input, shape index: {}]
  %s4 = inlined_call_operand.hbm [shape: f32[32,128], index: 4, kind: output, shape index: {}]
  %s5 = sld [smem:[#allocation0]]
  $region34: #{tpu_custom_call.1} parent=0
    _
  %s7 = ssub.s32 1, %s5
  %s8 = scalar_select 0, %s7, %s5
  $region1: #{tpu_custom_call.1} parent=0
    #allocation2 [shape = 'u8[16384]{0}', space=vmem, size = 0x4000, scoped, tag = 'input window, operand 0, single buffered']
    #allocation3 [shape = 's32[1]{0}', space=sflag, size = 0x4, scoped, tag = 'scoped memory for tpu_custom_call.1']
    #allocation4 [shape = 's32[1]{0}', space=sflag, size = 0x4, scoped, tag = 'scoped memory for tpu_custom_call.1']
    #allocation5 [shape = 'u8[16384]{0}', space=vmem, size = 0x4000, scoped, tag = 'input window, operand 1, single buffered']
    #allocation6 [shape = 's32[1]{0}', space=sflag, size = 0x4, scoped, tag = 'scoped memory for tpu_custom_call.1']
    #allocation7 [shape = 'u8[16384]{0}', space=vmem, size = 0x4000, scoped, tag = 'output window, operand 0, single buffered']
    %9 = vsyncpa [#allocation3], 0
    %10 = vsyncpa [#allocation6], 0
    %11 = vsyncpa [#allocation4], 0
    // Predicated region
    $region2: #{tpu_custom_call.1} parent=1 // pred_check
      _
    $region3: #{tpu_custom_call.1} parent=1 // pred_check_branch
      %13 = sbr.rel (0) target = $region5
    $region4: #{tpu_custom_call.1} parent=1 // pred_region
      %s15 = ssub.s32 512, 512
      %16 = vsyncadd [#allocation3], %s15
      %s17 = sshll.u32 [#allocation2], 4
      %s18 = int_to_ptr.vmem [resolvable:$true] %s17
      %23 = dma.hbm_to_vmem [thread:$0]  %s0, 512, %s18, [#allocation3], 128, 128, 8
    $region5: #{tpu_custom_call.1} parent=1 // pred_fallthru
      _
    // Predicated region
    $region6: #{tpu_custom_call.1} parent=1 // pred_check
      _
    $region7: #{tpu_custom_call.1} parent=1 // pred_check_branch
      %25 = sbr.rel (0) target = $region9
    $region8: #{tpu_custom_call.1} parent=1 // pred_region
      %s27 = ssub.s32 512, 512
      %28 = vsyncadd [#allocation6], %s27
      %s29 = sshll.u32 [#allocation5], 4
      %s30 = int_to_ptr.vmem [resolvable:$true] %s29
      %35 = dma.hbm_to_vmem [thread:$0]  %s1, 512, %s30, [#allocation6], 128, 128, 8
    $region9: #{tpu_custom_call.1} parent=1 // pred_fallthru
      _
    // Predicated region
    $region10: #{tpu_custom_call.1} parent=1 // pred_check
      _
    $region11: #{tpu_custom_call.1} parent=1 // pred_check_branch
      %37 = sbr.rel (0) target = $region13
    $region12: #{tpu_custom_call.1} parent=1 // pred_region
      _
    $region13: #{tpu_custom_call.1} parent=1 // pred_fallthru
      _
    // Predicated region
    $region14: #{tpu_custom_call.1} parent=1 // pred_check
      _
    $region15: #{tpu_custom_call.1} parent=1 // pred_check_branch
      %39 = sbr.rel (0) target = $region17
    $region16: #{tpu_custom_call.1} parent=1 // pred_region
      _
    $region17: #{tpu_custom_call.1} parent=1 // pred_fallthru
      _
    // Predicated region
    $region18: #{tpu_custom_call.1} parent=1 // pred_check
      _
    $region19: #{tpu_custom_call.1} parent=1 // pred_check_branch
      %41 = sbr.rel (0) target = $region21
    $region20: #{tpu_custom_call.1} parent=1 // pred_region
      %42 = dma.done [#allocation3], 512
    $region21: #{tpu_custom_call.1} parent=1 // pred_fallthru
      _
    // Predicated region
    $region22: #{tpu_custom_call.1} parent=1 // pred_check
      _
    $region23: #{tpu_custom_call.1} parent=1 // pred_check_branch
      %44 = sbr.rel (0) target = $region25
    $region24: #{tpu_custom_call.1} parent=1 // pred_region
      %45 = dma.done [#allocation6], 512
    $region25: #{tpu_custom_call.1} parent=1 // pred_fallthru
      _
    %v46 = vld [vmem:[#allocation2] sm:$0xff]
    %v47 = vld [vmem:[#allocation2 + $0x8] sm:$0xff]
    %v48 = vld [vmem:[#allocation2 + $0x10] sm:$0xff]
    %v49 = vld [vmem:[#allocation2 + $0x18] sm:$0xff]
    %v50 = vld [vmem:[#allocation5] sm:$0xff]
    %v51 = vld [vmem:[#allocation5 + $0x8] sm:$0xff]
    %v52 = vld [vmem:[#allocation5 + $0x10] sm:$0xff]
    %v53 = vld [vmem:[#allocation5 + $0x18] sm:$0xff]
    %v54 = vld [vmem:[%s2] sm:$0x1]
    %v56 = vlaneseq
    %v57 = vshrl.u32 %v56, 7
    %v58 = vsub.s32 0, %v57
    %v59 = vrot.slane %v54, %v58
    %vm61 = vcmask 261120
    %v63 = vsel %vm61, %v46, 0
    %v66 = vsel %vm61, %v47, 0
    %v69 = vsel %vm61, %v48, 0
    %v72 = vsel %vm61, %v49, 0
    %74 = vmatprep.subr.mxu0 0.0
    %75 = vmatpush1.msra.mxu0 %v50
    %76 = vmatprep.subr.mxu0 0.0
    %77 = vmatpush1.msra.mxu0 %v51
    %78 = vmatprep.subr.mxu0 0.0
    %79 = vmatpush1.msra.mxu0 %v52
    %80 = vmatprep.subr.mxu0 0.0
    %81 = vmatpush1.msra.mxu0 %v53
    %82 = vmatprep.subr.mxu0 0.0
    %83 = vmatpush1.msra.mxu0 0.0
    %84 = vmatprep.subr.mxu0 0.0
    %85 = vmatpush1.msra.mxu0 0.0
    %86 = vmatprep.subr.mxu0 0.0
    %87 = vmatpush1.msra.mxu0 0.0
    %88 = vmatprep.subr.mxu0 0.0
    %89 = vmatpush1.msra.mxu0 0.0
    %90 = vmatprep.subr.mxu0 0.0
    %91 = vmatpush1.msra.mxu0 0.0
    %92 = vmatprep.subr.mxu0 0.0
    %93 = vmatpush1.msra.mxu0 0.0
    %94 = vmatprep.subr.mxu0 0.0
    %95 = vmatpush1.msra.mxu0 0.0
    %96 = vmatprep.subr.mxu0 0.0
    %97 = vmatpush1.msra.mxu0 0.0
    %98 = vmatprep.subr.mxu0 0.0
    %99 = vmatpush1.msra.mxu0 0.0
    %100 = vmatprep.subr.mxu0 0.0
    %101 = vmatpush1.msra.mxu0 0.0
    %102 = vmatprep.subr.mxu0 0.0
    %103 = vmatpush1.msra.mxu0 0.0
    %104 = vmatprep.subr.mxu0 0.0
    %105 = vmatpush1.msra.mxu0 0.0
    %106 = vmatprep.subr.mxu0 0.0
    %107 = vmatpush1.msra.mxu0 0.0
    %108 = vmatprep.subr.mxu0 0.0
    %109 = vmatpush1.msra.mxu0 0.0
    %110 = vmatprep.subr.mxu0 0.0
    %111 = vmatpush1.msra.mxu0 0.0
    %112 = vmatprep.subr.mxu0 0.0
    %113 = vmatpush1.msra.mxu0 0.0
    %114 = vmatprep.subr.mxu0 0.0
    %115 = vmatpush1.msra.mxu0 0.0
    %116 = vmatprep.subr.mxu0 0.0
    %117 = vmatpush1.msra.mxu0 0.0
    %118 = vmatprep.subr.mxu0 0.0
    %119 = vmatpush1.msra.mxu0 0.0
    %120 = vmatprep.subr.mxu0 0.0
    %121 = vmatpush1.msra.mxu0 0.0
    %122 = vmatprep.subr.mxu0 0.0
    %123 = vmatpush1.msra.mxu0 0.0
    %124 = vmatprep.subr.mxu0 0.0
    %125 = vmatpush1.msra.mxu0 0.0
    %126 = vmatprep.subr.mxu0 0.0
    %127 = vmatpush1.msra.mxu0 0.0
    %128 = vmatprep.subr.mxu0 0.0
    %129 = vmatpush1.msra.mxu0 0.0
    %130 = vmatprep.subr.mxu0 0.0
    %131 = vmatpush1.msra.mxu0 0.0
    %132 = vmatprep.subr.mxu0 0.0
    %133 = vmatpush1.msra.mxu0 0.0
    %134 = vmatprep.subr.mxu0 0.0
    %135 = vmatpush1.msra.mxu0 0.0
    %136 = vmatprep.subr.mxu0 0.0
    %137 = vmatpush1.msra.mxu0 0.0
    %138 = vmatprep.mubr.f32.mxu0 0.0
    %139 = vmatmul.mubr.f32.gmra.mrb[0].mxu0 %v63
    %v140 = vpop.f32.mrb[0].mxu0
    %v141 = vadd.f32 %v59, %v140
    %v142 = vpop.f32.mrb[0].mxu0
    %143 = vmatprep.mubr.f32.mxu0 0.0
    %144 = vmatmul.mubr.f32.gmra.mrb[0].mxu0 %v66
    %v145 = vpop.f32.mrb[0].mxu0
    %v146 = vadd.f32 %v59, %v145
    %v147 = vpop.f32.mrb[0].mxu0
    %148 = vmatprep.mubr.f32.mxu0 0.0
    %149 = vmatmul.mubr.f32.gmra.mrb[0].mxu0 %v69
    %v150 = vpop.f32.mrb[0].mxu0
    %v151 = vadd.f32 %v59, %v150
    %v152 = vpop.f32.mrb[0].mxu0
    %153 = vmatprep.mubr.f32.mxu0 0.0
    %154 = vmatmul.mubr.f32.gmra.mrb[0].mxu0 %v72
    %v155 = vpop.f32.mrb[0].mxu0
    %v156 = vadd.f32 %v59, %v155
    %v157 = vpop.f32.mrb[0].mxu0
    %158 = vdwg.mxu0
    %v159 = vld [vmem:[%s3] sm:$0x1]
    %v160 = vadd.f32 %v141, %v46
    %v161 = vadd.f32 %v146, %v47
    %v162 = vadd.f32 %v151, %v48
    %v163 = vadd.f32 %v156, %v49
    %v164 = vmul.f32 %v160, %v160
    %v165 = vmul.f32 %v161, %v161
    %v166 = vmul.f32 %v162, %v162
    %v167 = vmul.f32 %v163, %v163
    %v168 = vsel %vm61, %v164, 0.0
    %169 = vadd.xlane.f32.xlu0 %v168
    %v170 = vpop.xlane.xlu0 %169
    %v171 = vsel %vm61, %v165, 0.0
    %172 = vadd.xlane.f32.xlu0 %v171
    %v173 = vpop.xlane.xlu0 %172
    %v174 = vsel %vm61, %v166, 0.0
    %175 = vadd.xlane.f32.xlu0 %v174
    %v176 = vpop.xlane.xlu0 %175
    %v177 = vsel %vm61, %v167, 0.0
    %178 = vadd.xlane.f32.xlu0 %v177
    %v179 = vpop.xlane.xlu0 %178
    %v180 = vrcp.pop 32.0
    %v181 = vmul.f32 %v170, %v180
    %v182 = vmul.f32 %v173, %v180
    %v183 = vmul.f32 %v176, %v180
    %v184 = vmul.f32 %v179, %v180
    %v185 = vadd.f32 %v181, 1e-05
    %v186 = vadd.f32 %v182, 1e-05
    %v187 = vadd.f32 %v183, 1e-05
    %v188 = vadd.f32 %v184, 1e-05
    %v189 = vrsqrt.pop %v185
    %v190 = vrsqrt.pop %v186
    %v191 = vrsqrt.pop %v187
    %v192 = vrsqrt.pop %v188
    %v193 = vmul.f32 %v160, %v189
    %v194 = vmul.f32 %v161, %v190
    %v195 = vmul.f32 %v162, %v191
    %v196 = vmul.f32 %v163, %v192
    %v198 = vlaneseq
    %v199 = vshrl.u32 %v198, 7
    %v200 = vsub.s32 0, %v199
    %v201 = vrot.slane %v159, %v200
    %v203 = vmul.f32 %v193, %v201
    %v204 = vmul.f32 %v194, %v201
    %v205 = vmul.f32 %v195, %v201
    %v206 = vmul.f32 %v196, %v201
    %207 = vrot.lane.b32.xlu0 %v46, 96
    %v208 = vpop.permute.xlu0 %207
    %209 = vrot.lane.b32.xlu0 %v47, 96
    %v210 = vpop.permute.xlu0 %209
    %211 = vrot.lane.b32.xlu0 %v48, 96
    %v212 = vpop.permute.xlu0 %211
    %213 = vrot.lane.b32.xlu0 %v49, 96
    %v214 = vpop.permute.xlu0 %213
    %v219 = vadd.f32 %v141, %v208
    %v220 = vadd.f32 %v146, %v210
    %v221 = vadd.f32 %v151, %v212
    %v222 = vadd.f32 %v156, %v214
    %v223 = vmul.f32 %v219, %v219
    %v224 = vmul.f32 %v220, %v220
    %v225 = vmul.f32 %v221, %v221
    %v226 = vmul.f32 %v222, %v222
    %v227 = vsel %vm61, %v223, 0.0
    %228 = vadd.xlane.f32.xlu0 %v227
    %v229 = vpop.xlane.xlu0 %228
    %v230 = vsel %vm61, %v224, 0.0
    %231 = vadd.xlane.f32.xlu0 %v230
    %v232 = vpop.xlane.xlu0 %231
    %v233 = vsel %vm61, %v225, 0.0
    %234 = vadd.xlane.f32.xlu0 %v233
    %v235 = vpop.xlane.xlu0 %234
    %v236 = vsel %vm61, %v226, 0.0
    %237 = vadd.xlane.f32.xlu0 %v236
    %v238 = vpop.xlane.xlu0 %237
    %v239 = vmul.f32 %v229, %v180
    %v240 = vmul.f32 %v232, %v180
    %v241 = vmul.f32 %v235, %v180
    %v242 = vmul.f32 %v238, %v180
    %v243 = vadd.f32 %v239, 1e-05
    %v244 = vadd.f32 %v240, 1e-05
    %v245 = vadd.f32 %v241, 1e-05
    %v246 = vadd.f32 %v242, 1e-05
    %v247 = vrsqrt.pop %v243
    %v248 = vrsqrt.pop %v244
    %v249 = vrsqrt.pop %v245
    %v250 = vrsqrt.pop %v246
    %v251 = vmul.f32 %v219, %v247
    %v252 = vmul.f32 %v220, %v248
    %v253 = vmul.f32 %v221, %v249
    %v254 = vmul.f32 %v222, %v250
    %v255 = vmul.f32 %v251, %v201
    %v256 = vmul.f32 %v252, %v201
    %v257 = vmul.f32 %v253, %v201
    %v258 = vmul.f32 %v254, %v201
    %259 = vrot.lane.b32.xlu0 %v46, 64
    %v260 = vpop.permute.xlu0 %259
    %261 = vrot.lane.b32.xlu0 %v47, 64
    %v262 = vpop.permute.xlu0 %261
    %263 = vrot.lane.b32.xlu0 %v48, 64
    %v264 = vpop.permute.xlu0 %263
    %265 = vrot.lane.b32.xlu0 %v49, 64
    %v266 = vpop.permute.xlu0 %265
    %v271 = vadd.f32 %v141, %v260
    %v272 = vadd.f32 %v146, %v262
    %v273 = vadd.f32 %v151, %v264
    %v274 = vadd.f32 %v156, %v266
    %v275 = vmul.f32 %v271, %v271
    %v276 = vmul.f32 %v272, %v272
    %v277 = vmul.f32 %v273, %v273
    %v278 = vmul.f32 %v274, %v274
    %v279 = vsel %vm61, %v275, 0.0
    %280 = vadd.xlane.f32.xlu0 %v279
    %v281 = vpop.xlane.xlu0 %280
    %v282 = vsel %vm61, %v276, 0.0
    %283 = vadd.xlane.f32.xlu0 %v282
    %v284 = vpop.xlane.xlu0 %283
    %v285 = vsel %vm61, %v277, 0.0
    %286 = vadd.xlane.f32.xlu0 %v285
    %v287 = vpop.xlane.xlu0 %286
    %v288 = vsel %vm61, %v278, 0.0
    %289 = vadd.xlane.f32.xlu0 %v288
    %v290 = vpop.xlane.xlu0 %289
    %v291 = vmul.f32 %v281, %v180
    %v292 = vmul.f32 %v284, %v180
    %v293 = vmul.f32 %v287, %v180
    %v294 = vmul.f32 %v290, %v180
    %v295 = vadd.f32 %v291, 1e-05
    %v296 = vadd.f32 %v292, 1e-05
    %v297 = vadd.f32 %v293, 1e-05
    %v298 = vadd.f32 %v294, 1e-05
    %v299 = vrsqrt.pop %v295
    %v300 = vrsqrt.pop %v296
    %v301 = vrsqrt.pop %v297
    %v302 = vrsqrt.pop %v298
    %v303 = vmul.f32 %v271, %v299
    %v304 = vmul.f32 %v272, %v300
    %v305 = vmul.f32 %v273, %v301
    %v306 = vmul.f32 %v274, %v302
    %v307 = vmul.f32 %v303, %v201
    %v308 = vmul.f32 %v304, %v201
    %v309 = vmul.f32 %v305, %v201
    %v310 = vmul.f32 %v306, %v201
    %311 = vrot.lane.b32.xlu0 %v46, 32
    %v312 = vpop.permute.xlu0 %311
    %313 = vrot.lane.b32.xlu0 %v47, 32
    %v314 = vpop.permute.xlu0 %313
    %315 = vrot.lane.b32.xlu0 %v48, 32
    %v316 = vpop.permute.xlu0 %315
    %317 = vrot.lane.b32.xlu0 %v49, 32
    %v318 = vpop.permute.xlu0 %317
    %v323 = vadd.f32 %v141, %v312
    %v324 = vadd.f32 %v146, %v314
    %v325 = vadd.f32 %v151, %v316
    %v326 = vadd.f32 %v156, %v318
    %v327 = vmul.f32 %v323, %v323
    %v328 = vmul.f32 %v324, %v324
    %v329 = vmul.f32 %v325, %v325
    %v330 = vmul.f32 %v326, %v326
    %v331 = vsel %vm61, %v327, 0.0
    %332 = vadd.xlane.f32.xlu0 %v331
    %v333 = vpop.xlane.xlu0 %332
    %v334 = vsel %vm61, %v328, 0.0
    %335 = vadd.xlane.f32.xlu0 %v334
    %v336 = vpop.xlane.xlu0 %335
    %v337 = vsel %vm61, %v329, 0.0
    %338 = vadd.xlane.f32.xlu0 %v337
    %v339 = vpop.xlane.xlu0 %338
    %v340 = vsel %vm61, %v330, 0.0
    %341 = vadd.xlane.f32.xlu0 %v340
    %v342 = vpop.xlane.xlu0 %341
    %v343 = vmul.f32 %v333, %v180
    %v344 = vmul.f32 %v336, %v180
    %v345 = vmul.f32 %v339, %v180
    %v346 = vmul.f32 %v342, %v180
    %v347 = vadd.f32 %v343, 1e-05
    %v348 = vadd.f32 %v344, 1e-05
    %v349 = vadd.f32 %v345, 1e-05
    %v350 = vadd.f32 %v346, 1e-05
    %v351 = vrsqrt.pop %v347
    %v352 = vrsqrt.pop %v348
    %v353 = vrsqrt.pop %v349
    %v354 = vrsqrt.pop %v350
    %v355 = vmul.f32 %v323, %v351
    %v356 = vmul.f32 %v324, %v352
    %v357 = vmul.f32 %v325, %v353
    %v358 = vmul.f32 %v326, %v354
    %v359 = vmul.f32 %v355, %v201
    %v360 = vmul.f32 %v356, %v201
    %v361 = vmul.f32 %v357, %v201
    %v362 = vmul.f32 %v358, %v201
    %367 = vrot.lane.b32.xlu0 %v255, 32
    %v368 = vpop.permute.xlu0 %367
    %369 = vrot.lane.b32.xlu0 %v256, 32
    %v370 = vpop.permute.xlu0 %369
    %371 = vrot.lane.b32.xlu0 %v257, 32
    %v372 = vpop.permute.xlu0 %371
    %373 = vrot.lane.b32.xlu0 %v258, 32
    %v374 = vpop.permute.xlu0 %373
    %383 = vrot.lane.b32.xlu0 %v307, 64
    %v384 = vpop.permute.xlu0 %383
    %385 = vrot.lane.b32.xlu0 %v308, 64
    %v386 = vpop.permute.xlu0 %385
    %387 = vrot.lane.b32.xlu0 %v309, 64
    %v388 = vpop.permute.xlu0 %387
    %389 = vrot.lane.b32.xlu0 %v310, 64
    %v390 = vpop.permute.xlu0 %389
    %399 = vrot.lane.b32.xlu0 %v359, 96
    %v400 = vpop.permute.xlu0 %399
    %401 = vrot.lane.b32.xlu0 %v360, 96
    %v402 = vpop.permute.xlu0 %401
    %403 = vrot.lane.b32.xlu0 %v361, 96
    %v404 = vpop.permute.xlu0 %403
    %405 = vrot.lane.b32.xlu0 %v362, 96
    %v406 = vpop.permute.xlu0 %405
    %v411 = vsel %vm61, %v203, %v368
    %v412 = vsel %vm61, %v204, %v370
    %v413 = vsel %vm61, %v205, %v372
    %v414 = vsel %vm61, %v206, %v374
    %vm415 = vcmask 523264
    %v416 = vsel %vm415, %v411, %v384
    %v417 = vsel %vm415, %v412, %v386
    %v418 = vsel %vm415, %v413, %v388
    %v419 = vsel %vm415, %v414, %v390
    %vm420 = vcmask 785408
    %v421 = vsel %vm420, %v416, %v400
    %v422 = vsel %vm420, %v417, %v402
    %v423 = vsel %vm420, %v418, %v404
    %v424 = vsel %vm420, %v419, %v406
    %425 = vst [vmem:[#allocation7] sm:$0xff] %v421
    %426 = vst [vmem:[#allocation7 + $0x8] sm:$0xff] %v422
    %427 = vst [vmem:[#allocation7 + $0x10] sm:$0xff] %v423
    %428 = vst [vmem:[#allocation7 + $0x18] sm:$0xff] %v424
    // Predicated region
    $region26: #{tpu_custom_call.1} parent=1 // pred_check
      _
    $region27: #{tpu_custom_call.1} parent=1 // pred_check_branch
      %430 = sbr.rel (0) target = $region29
    $region28: #{tpu_custom_call.1} parent=1 // pred_region
      %s432 = ssub.s32 512, 512
      %433 = vsyncadd [#allocation4], %s432
      %s434 = sshll.u32 [#allocation7], 4
      %s435 = int_to_ptr.vmem [resolvable:$true] %s434
      %440 = dma.vmem_to_hbm [thread:$0]  %s435, 512, %s4, [#allocation4], 128, 128, 8
    $region29: #{tpu_custom_call.1} parent=1 // pred_fallthru
      _
    // Predicated region
    $region30: #{tpu_custom_call.1} parent=1 // pred_check
      _
    $region31: #{tpu_custom_call.1} parent=1 // pred_check_branch
      %442 = sbr.rel (0) target = $region33
    $region32: #{tpu_custom_call.1} parent=1 // pred_region
      %443 = dma.done [#allocation4], 512
    $region33: #{tpu_custom_call.1} parent=1 // pred_fallthru
      _
    %444 = vsyncpa [#allocation3], 1
    %445 = vsyncpa [#allocation6], 1
    %446 = vsyncpa [#allocation4], 1

</llo_original>
